<compile_context>
chip_gen: v7x
topology: tpu7x:2x2x1
jax: 0.10.0
libtpu: 0.0.40
codegen_flags: <defaults>
</compile_context>

<pallas_src>
import math

import jax
import jax.numpy as jnp
from jax.experimental import pallas as pl
from jax.experimental.pallas import tpu as pltpu

LANES = 128
SUBLANES = 8
TARGET_M = 512   # target nodes-per-grid-step (lane dim); 512 ~ 85% of HBM roofline


def _round_up(v, m):
    return ((v + m - 1) // m) * m


def _choose_bt(B, N):
    """Graphs per grid block.

    Bt*N must be a multiple of 128 (lane width) whenever the grid has more than
    one block; aim for Bt*N ~= TARGET_M, but keep >= 2 blocks when the batch
    allows it so v7x's two TensorCores both get work.
    """
    bt_align = LANES // math.gcd(N, LANES)          # smallest Bt with Bt*N % 128 == 0
    bt = max(bt_align, (TARGET_M // N) // bt_align * bt_align)
    if pl.cdiv(B, bt) < 2:                          # would collapse to a single block
        bt_half = _round_up(max(1, pl.cdiv(B, 2)), bt_align)
        bt = min(bt, bt_half)                       # prefer 2 blocks if it needs less padding
    return bt


def gcn_kernel(a_ref, x_ref, w1_ref, b1_ref, w2_ref, b2_ref, out_ref):
    # a_ref : (M, M)   bf16  block-diagonal adjacency^T for this block's Bt graphs
    # x_ref : (Fin, M) bf16  node features, transposed (features on sublanes)
    # w1_ref: (H, Fin) f32   W1^T          b1_ref: (H, 1) f32
    # w2_ref: (C8, H)  f32   W2^T (padded) b2_ref: (C8, 1) f32
    # out_ref: (C8, M) f32   h2^T (classes on sublanes, nodes on lanes)
    a_t = a_ref[...]

    # ---- layer 1: aggregation (one big MXU matmul), then linear + relu (f32) ----
    agg1_t = jnp.dot(x_ref[...], a_t, preferred_element_type=jnp.float32)      # (Fin, M)
    h1_t = jnp.dot(w1_ref[...], agg1_t, preferred_element_type=jnp.float32)    # (H, M)
    h1_t = jnp.maximum(h1_t + b1_ref[...], 0.0)

    # ---- layer 2 (last=True) ----
    agg2_t = jnp.dot(h1_t.astype(jnp.bfloat16), a_t,
                     preferred_element_type=jnp.float32)                       # (H, M)
    h2_t = jnp.dot(w2_ref[...], agg2_t, preferred_element_type=jnp.float32)    # (C8, M)
    out_ref[...] = jnp.maximum(h2_t + b2_ref[...], 0.0)                        # lane-dense store


def gcn_forward(adj, x, w1, b1, w2, b2):
    """adj: [B,N,N] (A[b,dst,src]), x: [B,N,Fin], w1: [Fin,H], b1: [1,H], w2: [H,C], b2: [1,C]"""
    B, N, Fin = x.shape
    H = w1.shape[1]
    C = w2.shape[1]

    Bt = _choose_bt(B, N)
    B_pad = _round_up(B, Bt)
    num_blocks = B_pad // Bt
    M = Bt * N                                     # multiple of 128 by construction
    C8 = _round_up(C, SUBLANES)                    # classes padded to a sublane multiple only

    # --- batch padding (padded graphs produce relu(bias) junk; sliced away below) ---
    adj_p = jnp.zeros((B_pad, N, N), jnp.float32).at[:B].set(adj.astype(jnp.float32))
    x_p = jnp.zeros((B_pad, N, Fin), jnp.float32).at[:B].set(x.astype(jnp.float32))

    # --- transposed, lane-dense node features: (Fin, B_pad*N), bf16 ---
    x_t = x_p.reshape(B_pad * N, Fin).T.astype(jnp.bfloat16)

    # --- block-diagonal transposed adjacency, one (M, M) slab per grid block ---
    # slab[blk][g*N + i, g*N + j] = adj[blk*Bt + g, j, i]   (i.e. A^T per graph)
    adj_t = jnp.swapaxes(adj_p, 1, 2).reshape(num_blocks, Bt, N, N)
    eye_bt = jnp.eye(Bt, dtype=jnp.float32)
    a_bd_t = adj_t[:, :, :, None, :] * eye_bt[None, :, None, :, None]   # (nb, Bt, N, Bt, N)
    a_bd_t = a_bd_t.reshape(num_blocks * M, M).astype(jnp.bfloat16)

    # --- transposed parameters (tiny; stay f32 resident in VMEM) ---
    w1_t = w1.astype(jnp.float32).T                                      # (H, Fin)
    b1_t = b1.astype(jnp.float32).reshape(H, 1)                          # (H, 1)
    w2_t = jnp.zeros((C8, H), jnp.float32).at[:C].set(w2.astype(jnp.float32).T)
    b2_t = jnp.zeros((C8, 1), jnp.float32).at[:C, 0].set(b2.astype(jnp.float32).reshape(-1))

    cost = pl.CostEstimate(
        flops=num_blocks * 2 * M * (M * Fin + Fin * H + M * H + H * C8),
        transcendentals=0,
        bytes_accessed=(2 * (a_bd_t.size + x_t.size)            # bf16 inputs
                        + 4 * (w1_t.size + b1_t.size + w2_t.size + b2_t.size)
                        + 4 * C8 * B_pad * N),                  # f32 output
    )

    h_t = pl.pallas_call(
        gcn_kernel,
        out_shape=jax.ShapeDtypeStruct((C8, B_pad * N), jnp.float32),
        grid_spec=pltpu.PrefetchScalarGridSpec(
            num_scalar_prefetch=0,
            grid=(num_blocks,),
            in_specs=[
                pl.BlockSpec((M, M), lambda g: (g, 0)),       # block-diag A^T slab (lane-dense)
                pl.BlockSpec((Fin, M), lambda g: (0, g)),     # X^T (lane-dense)
                pl.BlockSpec((H, Fin), lambda g: (0, 0)),     # W1^T (resident)
                pl.BlockSpec((H, 1), lambda g: (0, 0)),       # b1
                pl.BlockSpec((C8, H), lambda g: (0, 0)),      # W2^T (class-padded to 8)
                pl.BlockSpec((C8, 1), lambda g: (0, 0)),      # b2
            ],
            out_specs=pl.BlockSpec((C8, M), lambda g: (0, g)),  # h2^T, classes on sublanes
        ),
        compiler_params=pltpu.CompilerParams(
            dimension_semantics=("parallel",)),
        cost_estimate=cost,
    )(a_bd_t, x_t, w1_t, b1_t, w2_t, b2_t)

    # Strip class/batch padding; un-transpose; dgl.mean_nodes readout in XLA.
    h_node = h_t[:C].T.reshape(B_pad, N, C)[:B]            # (B, N, C)
    pooled = jnp.mean(h_node, axis=1)                      # (B, C)
    a_grad = [h_node]                                      # mirrors GCNModel.a_grad bookkeeping
    return pooled, a_grad, h_node


def gcn_reference(adj, x, w1, b1, w2, b2):
    h1 = jnp.maximum(jnp.einsum("bnm,bmf->bnf", adj, x) @ w1 + b1, 0.0)
    h2 = jnp.maximum(jnp.einsum("bnm,bmf->bnf", adj, h1) @ w2 + b2, 0.0)
    return jnp.mean(h2, axis=1), h2


if __name__ == "__main__":
    # Small shapes implied by the module: B graphs, N nodes each.
    B, N = 2, 16
    in_feats, hidden_size, num_classes = 8, 32, 4

    key = jax.random.PRNGKey(0)
    k_x, k_adj, k_mask, k_w1, k_b1, k_w2, k_b2 = jax.random.split(key, 7)

    # Node features.
    x = jax.random.normal(k_x, (B, N, in_feats), dtype=jnp.float32)

    # Weighted adjacency: random edge weights with ~50% sparsity + self loops.
    w_edges = jax.random.uniform(k_adj, (B, N, N), dtype=jnp.float32)
    mask = (jax.random.uniform(k_mask, (B, N, N)) < 0.5).astype(jnp.float32)
    eye = jnp.broadcast_to(jnp.eye(N, dtype=jnp.float32), (B, N, N))
    adj = w_edges * jnp.maximum(mask, eye)

    # Parameters (PyTorch stores weight as [out, in], computes x @ W^T; we store [in, out]).
    lim1 = 1.0 / jnp.sqrt(float(in_feats))
    w1 = jax.random.uniform(k_w1, (in_feats, hidden_size), jnp.float32, -lim1, lim1)
    b1 = jax.random.uniform(k_b1, (1, hidden_size), jnp.float32, -lim1, lim1)
    lim2 = 1.0 / jnp.sqrt(float(hidden_size))
    w2 = jax.random.uniform(k_w2, (hidden_size, num_classes), jnp.float32, -lim2, lim2)
    b2 = jax.random.uniform(k_b2, (1, num_classes), jnp.float32, -lim2, lim2)

    pooled, a_grad, h_node = gcn_forward(adj, x, w1, b1, w2, b2)
    jax.block_until_ready((pooled, h_node))

    # Correctness check against plain-JAX f32 reference (tolerance relaxed for the
    # bf16-cast aggregation inputs; accumulation is f32).
    ref_pooled, ref_hnode = gcn_reference(adj, x, w1, b1, w2, b2)
    assert pooled.shape == (B, num_classes)
    assert h_node.shape == (B, N, num_classes)
    assert jnp.allclose(pooled, ref_pooled, atol=5e-2, rtol=5e-2)
    assert jnp.allclose(h_node, ref_hnode, atol=5e-2, rtol=5e-2)
    assert len(a_grad) == 1

    print("KERNEL_OK")
</pallas_src>

<mosaic_0001>
module attributes {stable_mosaic.version = 11 : i64} {
  func.func @gcn_kernel(%arg0: i32, %arg1: memref<128x128xbf16, #tpu.memory_space<vmem>>, %arg2: memref<8x128xbf16, #tpu.memory_space<vmem>>, %arg3: memref<32x8xf32, #tpu.memory_space<vmem>>, %arg4: memref<32x1xf32, #tpu.memory_space<vmem>>, %arg5: memref<8x32xf32, #tpu.memory_space<vmem>>, %arg6: memref<8x1xf32, #tpu.memory_space<vmem>>, %arg7: memref<8x128xf32, #tpu.memory_space<vmem>>) attributes {dimension_semantics = [#tpu.dimension_semantics<parallel>], iteration_bounds = array<i64: 1>, scalar_prefetch = 0 : i64, scratch_operands = 0 : i64, tpu.core_type = #tpu.core_type<tc>, window_params = [{transform_indices = @transform_0, window_bounds = array<i64: 128, 128>}, {transform_indices = @transform_1, window_bounds = array<i64: 8, 128>}, {pipeline_mode = #tpu.pipeline_mode<synchronous>, transform_indices = @transform_2, window_bounds = array<i64: 32, 8>}, {pipeline_mode = #tpu.pipeline_mode<synchronous>, transform_indices = @transform_3, window_bounds = array<i64: 32, 1>}, {pipeline_mode = #tpu.pipeline_mode<synchronous>, transform_indices = @transform_4, window_bounds = array<i64: 8, 32>}, {pipeline_mode = #tpu.pipeline_mode<synchronous>, transform_indices = @transform_5, window_bounds = array<i64: 8, 1>}, {transform_indices = @transform_6, window_bounds = array<i64: 8, 128>}]} {
    %c0 = arith.constant 0 : index
    %c0_0 = arith.constant 0 : index
    %0 = vector.load %arg1[%c0, %c0_0] : memref<128x128xbf16, #tpu.memory_space<vmem>>, vector<128x128xbf16>
    %c0_1 = arith.constant 0 : index
    %c0_2 = arith.constant 0 : index
    %1 = vector.load %arg2[%c0_1, %c0_2] : memref<8x128xbf16, #tpu.memory_space<vmem>>, vector<8x128xbf16>
    %cst = arith.constant dense<0.000000e+00> : vector<8x128xf32>
    %2 = tpu.matmul %1, %0, %cst {dimension_numbers = #tpu.dot_dimension_numbers<[1], [0], [0], [1], [0, 0, 1, 1], [], []>} : vector<8x128xbf16>, vector<128x128xbf16>, vector<8x128xf32> -> vector<8x128xf32>
    %c0_3 = arith.constant 0 : index
    %c0_4 = arith.constant 0 : index
    %3 = vector.load %arg3[%c0_3, %c0_4] : memref<32x8xf32, #tpu.memory_space<vmem>>, vector<32x8xf32>
    %cst_5 = arith.constant dense<0.000000e+00> : vector<32x128xf32>
    %4 = tpu.matmul %3, %2, %cst_5 {dimension_numbers = #tpu.dot_dimension_numbers<[1], [0], [0], [1], [0, 0, 1, 1], [], []>} : vector<32x8xf32>, vector<8x128xf32>, vector<32x128xf32> -> vector<32x128xf32>
    %c0_6 = arith.constant 0 : index
    %c0_7 = arith.constant 0 : index
    %5 = vector.load %arg4[%c0_6, %c0_7] : memref<32x1xf32, #tpu.memory_space<vmem>>, vector<32x1xf32>
    %6 = vector.broadcast %5 : vector<32x1xf32> to vector<32x128xf32>
    %7 = arith.addf %4, %6 : vector<32x128xf32>
    %cst_8 = arith.constant 0.000000e+00 : f32
    %8 = vector.broadcast %cst_8 : f32 to vector<32x128xf32>
    %9 = arith.maximumf %7, %8 : vector<32x128xf32>
    %10 = arith.truncf %9 : vector<32x128xf32> to vector<32x128xbf16>
    %cst_9 = arith.constant dense<0.000000e+00> : vector<32x128xf32>
    %11 = tpu.matmul %10, %0, %cst_9 {dimension_numbers = #tpu.dot_dimension_numbers<[1], [0], [0], [1], [0, 0, 1, 1], [], []>} : vector<32x128xbf16>, vector<128x128xbf16>, vector<32x128xf32> -> vector<32x128xf32>
    %c0_10 = arith.constant 0 : index
    %c0_11 = arith.constant 0 : index
    %12 = vector.load %arg5[%c0_10, %c0_11] : memref<8x32xf32, #tpu.memory_space<vmem>>, vector<8x32xf32>
    %cst_12 = arith.constant dense<0.000000e+00> : vector<8x128xf32>
    %13 = tpu.matmul %12, %11, %cst_12 {dimension_numbers = #tpu.dot_dimension_numbers<[1], [0], [0], [1], [0, 0, 1, 1], [], []>} : vector<8x32xf32>, vector<32x128xf32>, vector<8x128xf32> -> vector<8x128xf32>
    %c0_13 = arith.constant 0 : index
    %c0_14 = arith.constant 0 : index
    %14 = vector.load %arg6[%c0_13, %c0_14] : memref<8x1xf32, #tpu.memory_space<vmem>>, vector<8x1xf32>
    %15 = vector.broadcast %14 : vector<8x1xf32> to vector<8x128xf32>
    %16 = arith.addf %13, %15 : vector<8x128xf32>
    %cst_15 = arith.constant 0.000000e+00 : f32
    %17 = vector.broadcast %cst_15 : f32 to vector<8x128xf32>
    %18 = arith.maximumf %16, %17 : vector<8x128xf32>
    %c0_16 = arith.constant 0 : index
    %c0_17 = arith.constant 0 : index
    %19 = vector.load %arg7[%c0_16, %c0_17] : memref<8x128xf32, #tpu.memory_space<vmem>>, vector<8x128xf32>
    tpu.vector_store %arg7[%c0_16, %c0_17], %18 {strides = array<i32>} : memref<8x128xf32, #tpu.memory_space<vmem>>, vector<8x128xf32>,
    return
  }
  func.func @transform_0(%arg0: i32) -> (i32, i32) {
    %c0_i32 = arith.constant 0 : i32
    %c0_i32_0 = arith.constant 0 : i32
    return %arg0, %c0_i32 : i32, i32
  }
  func.func @transform_1(%arg0: i32) -> (i32, i32) {
    %c0_i32 = arith.constant 0 : i32
    %c0_i32_0 = arith.constant 0 : i32
    return %c0_i32, %arg0 : i32, i32
  }
  func.func @transform_2(%arg0: i32) -> (i32, i32) {
    %c0_i32 = arith.constant 0 : i32
    %c0_i32_0 = arith.constant 0 : i32
    %c0_i32_1 = arith.constant 0 : i32
    return %c0_i32, %c0_i32_0 : i32, i32
  }
  func.func @transform_3(%arg0: i32) -> (i32, i32) {
    %c0_i32 = arith.constant 0 : i32
    %c0_i32_0 = arith.constant 0 : i32
    %c0_i32_1 = arith.constant 0 : i32
    return %c0_i32, %c0_i32_0 : i32, i32
  }
  func.func @transform_4(%arg0: i32) -> (i32, i32) {
    %c0_i32 = arith.constant 0 : i32
    %c0_i32_0 = arith.constant 0 : i32
    %c0_i32_1 = arith.constant 0 : i32
    return %c0_i32, %c0_i32_0 : i32, i32
  }
  func.func @transform_5(%arg0: i32) -> (i32, i32) {
    %c0_i32 = arith.constant 0 : i32
    %c0_i32_0 = arith.constant 0 : i32
    %c0_i32_1 = arith.constant 0 : i32
    return %c0_i32, %c0_i32_0 : i32, i32
  }
  func.func @transform_6(%arg0: i32) -> (i32, i32) {
    %c0_i32 = arith.constant 0 : i32
    %c0_i32_0 = arith.constant 0 : i32
    return %c0_i32, %arg0 : i32, i32
  }
}

</mosaic_0001>

<llo_original>
// kernel: tpu_custom_call.1
$region0: #{tpu_custom_call.1}
  #allocation0 [shape = 'u32[]', space=smem, size = 0x4, offset = 0x4, fixed_abs, tag = 'smem constant byte address 0x4 - core index']
  #allocation1 [shape = 'u32[144,128]{1,0:T(1,128)}', space=vmem, size = 0x12000, scoped, tag = 'internal scratch']
  %s0 = inlined_call_operand.vmem [shape: bf16[128,128], index: 0, kind: input, shape index: {}]
  %s1 = inlined_call_operand.vmem [shape: bf16[8,128], index: 1, kind: input, shape index: {}]
  %s2 = inlined_call_operand.vmem [shape: f32[32,8], index: 2, kind: input, shape index: {}]
  %s3 = inlined_call_operand.vmem [shape: f32[32,1], index: 3, kind: input, shape index: {}]
  %s4 = inlined_call_operand.vmem [shape: f32[8,32], index: 4, kind: input, shape index: {}]
  %s5 = inlined_call_operand.vmem [shape: f32[8,1], index: 5, kind: input, shape index: {}]
  %s6 = inlined_call_operand.hbm [shape: f32[8,128], index: 6, kind: output, shape index: {}]
  %s7 = sld [smem:[#allocation0]]
  $region34: #{tpu_custom_call.1} parent=0
    _
  %s9 = ssub.s32 1, %s7
  %s10 = scalar_select 0, %s9, %s7
  $region1: #{tpu_custom_call.1} parent=0
    #allocation2 [shape = 'u8[4096]{0}', space=vmem, size = 0x1000, scoped, tag = 'output window, operand 0, single buffered']
    #allocation3 [shape = 's32[1]{0}', space=sflag, size = 0x4, scoped, tag = 'scoped memory for tpu_custom_call.1']
    %11 = vsyncpa [#allocation3], 0
    // Predicated region
    $region2: #{tpu_custom_call.1} parent=1 // pred_check
      _
    $region3: #{tpu_custom_call.1} parent=1 // pred_check_branch
      %13 = sbr.rel (0) target = $region5
    $region4: #{tpu_custom_call.1} parent=1 // pred_region
      _
    $region5: #{tpu_custom_call.1} parent=1 // pred_fallthru
      _
    // Predicated region
    $region6: #{tpu_custom_call.1} parent=1 // pred_check
      _
    $region7: #{tpu_custom_call.1} parent=1 // pred_check_branch
      %15 = sbr.rel (0) target = $region9
    $region8: #{tpu_custom_call.1} parent=1 // pred_region
      _
    $region9: #{tpu_custom_call.1} parent=1 // pred_fallthru
      _
    // Predicated region
    $region10: #{tpu_custom_call.1} parent=1 // pred_check
      _
    $region11: #{tpu_custom_call.1} parent=1 // pred_check_branch
      %17 = sbr.rel (0) target = $region13
    $region12: #{tpu_custom_call.1} parent=1 // pred_region
      _
    $region13: #{tpu_custom_call.1} parent=1 // pred_fallthru
      _
    // Predicated region
    $region14: #{tpu_custom_call.1} parent=1 // pred_check
      _
    $region15: #{tpu_custom_call.1} parent=1 // pred_check_branch
      %19 = sbr.rel (0) target = $region17
    $region16: #{tpu_custom_call.1} parent=1 // pred_region
      _
    $region17: #{tpu_custom_call.1} parent=1 // pred_fallthru
      _
    // Predicated region
    $region18: #{tpu_custom_call.1} parent=1 // pred_check
      _
    $region19: #{tpu_custom_call.1} parent=1 // pred_check_branch
      %21 = sbr.rel (0) target = $region21
    $region20: #{tpu_custom_call.1} parent=1 // pred_region
      _
    $region21: #{tpu_custom_call.1} parent=1 // pred_fallthru
      _
    // Predicated region
    $region22: #{tpu_custom_call.1} parent=1 // pred_check
      _
    $region23: #{tpu_custom_call.1} parent=1 // pred_check_branch
      %23 = sbr.rel (0) target = $region25
    $region24: #{tpu_custom_call.1} parent=1 // pred_region
      _
    $region25: #{tpu_custom_call.1} parent=1 // pred_fallthru
      _
    %v25 = vld [vmem:[%s0] sm:$0xf]
    %v26 = vld [vmem:[%s0 + $0x4] sm:$0xf]
    %v27 = vld [vmem:[%s0 + $0x8] sm:$0xf]
    %v28 = vld [vmem:[%s0 + $0xc] sm:$0xf]
    %v29 = vld [vmem:[%s0 + $0x10] sm:$0xf]
    %v30 = vld [vmem:[%s0 + $0x14] sm:$0xf]
    %v31 = vld [vmem:[%s0 + $0x18] sm:$0xf]
    %v32 = vld [vmem:[%s0 + $0x1c] sm:$0xf]
    %v33 = vld [vmem:[%s0 + $0x20] sm:$0xf]
    %v34 = vld [vmem:[%s0 + $0x24] sm:$0xf]
    %v35 = vld [vmem:[%s0 + $0x28] sm:$0xf]
    %v36 = vld [vmem:[%s0 + $0x2c] sm:$0xf]
    %v37 = vld [vmem:[%s0 + $0x30] sm:$0xf]
    %v38 = vld [vmem:[%s0 + $0x34] sm:$0xf]
    %v39 = vld [vmem:[%s0 + $0x38] sm:$0xf]
    %v40 = vld [vmem:[%s0 + $0x3c] sm:$0xf]
    %v41 = vld [vmem:[%s1] sm:$0xf]
    %v58 = vunpack.c.l.b16 %v25
    %v59 = vunpack.c.l.b16 %v26
    %v60 = vunpack.c.l.b16 %v27
    %v61 = vunpack.c.l.b16 %v28
    %v62 = vunpack.c.l.b16 %v29
    %v63 = vunpack.c.l.b16 %v30
    %v64 = vunpack.c.l.b16 %v31
    %v65 = vunpack.c.l.b16 %v32
    %v66 = vunpack.c.l.b16 %v33
    %v67 = vunpack.c.l.b16 %v34
    %v68 = vunpack.c.l.b16 %v35
    %v69 = vunpack.c.l.b16 %v36
    %v70 = vunpack.c.l.b16 %v37
    %v71 = vunpack.c.l.b16 %v38
    %v72 = vunpack.c.l.b16 %v39
    %v73 = vunpack.c.l.b16 %v40
    %v74 = vpack.c.b16 %v59, %v58
    %v75 = vpack.c.b16 %v61, %v60
    %v76 = vpack.c.b16 %v63, %v62
    %v77 = vpack.c.b16 %v65, %v64
    %v78 = vpack.c.b16 %v67, %v66
    %v79 = vpack.c.b16 %v69, %v68
    %v80 = vpack.c.b16 %v71, %v70
    %v81 = vpack.c.b16 %v73, %v72
    %90 = vmatprep.subr.bf16.mxu0 0
    %91 = vmatpush1.bf16.msra.mxu0 %v74
    %92 = vmatprep.subr.bf16.mxu0 0
    %93 = vmatpush1.bf16.msra.mxu0 %v75
    %94 = vmatprep.subr.bf16.mxu0 0
    %95 = vmatpush1.bf16.msra.mxu0 %v76
    %96 = vmatprep.subr.bf16.mxu0 0
    %97 = vmatpush1.bf16.msra.mxu0 %v77
    %98 = vmatprep.subr.bf16.mxu0 0
    %99 = vmatpush1.bf16.msra.mxu0 %v78
    %100 = vmatprep.subr.bf16.mxu0 0
    %101 = vmatpush1.bf16.msra.mxu0 %v79
    %102 = vmatprep.subr.bf16.mxu0 0
    %103 = vmatpush1.bf16.msra.mxu0 %v80
    %104 = vmatprep.subr.bf16.mxu0 0
    %105 = vmatpush1.bf16.msra.mxu0 %v81
    %106 = vmatprep.subr.bf16.mxu0 0
    %107 = vmatpush1.bf16.msra.mxu0 0
    %108 = vmatprep.subr.bf16.mxu0 0
    %109 = vmatpush1.bf16.msra.mxu0 0
    %110 = vmatprep.subr.bf16.mxu0 0
    %111 = vmatpush1.bf16.msra.mxu0 0
    %112 = vmatprep.subr.bf16.mxu0 0
    %113 = vmatpush1.bf16.msra.mxu0 0
    %114 = vmatprep.subr.bf16.mxu0 0
    %115 = vmatpush1.bf16.msra.mxu0 0
    %116 = vmatprep.subr.bf16.mxu0 0
    %117 = vmatpush1.bf16.msra.mxu0 0
    %118 = vmatprep.subr.bf16.mxu0 0
    %119 = vmatpush1.bf16.msra.mxu0 0
    %120 = vmatprep.subr.bf16.mxu0 0
    %121 = vmatpush1.bf16.msra.mxu0 0
    %122 = vmatprep.mubr.bf16.mxu0 0
    %123 = vmatmul.mubr.bf16.gmra.mrb[0].mxu0 %v41
    %v124 = vpop.f32.mrb[0].mxu0
    %v125 = vadd.f32 0.0, %v124
    %v126 = vpop.f32.mrb[0].mxu0
    %v127 = vpop.f32.mrb[0].mxu0
    %v128 = vpop.f32.mrb[0].mxu0
    %129 = vdwg.mxu0
    %v130 = vld [vmem:[%s2] sm:$0xff]
    %v131 = vld [vmem:[%s2 + $0x8] sm:$0xff]
    %v132 = vld [vmem:[%s2 + $0x10] sm:$0xff]
    %v133 = vld [vmem:[%s2 + $0x18] sm:$0xff]
    %v134 = vld [vmem:[%s3] sm:$0xff]
    %v135 = vld [vmem:[%s3 + $0x8] sm:$0xff]
    %v136 = vld [vmem:[%s3 + $0x10] sm:$0xff]
    %v137 = vld [vmem:[%s3 + $0x18] sm:$0xff]
    %139 = vset.pattern.permute.xlu0 0
    %140 = vperm.xlu0 %139, %v134
    %v141 = vpop.permute.xlu0 %140
    %144 = vset.pattern.permute.xlu0 0
    %145 = vperm.xlu0 %144, %v135
    %v146 = vpop.permute.xlu0 %145
    %149 = vset.pattern.permute.xlu0 0
    %150 = vperm.xlu0 %149, %v136
    %v151 = vpop.permute.xlu0 %150
    %154 = vset.pattern.permute.xlu0 0
    %155 = vperm.xlu0 %154, %v137
    %v156 = vpop.permute.xlu0 %155
    %vm158 = vcmask 64512
    %v160 = vsel %vm158, %v130, 0
    %v163 = vsel %vm158, %v131, 0
    %v166 = vsel %vm158, %v132, 0
    %v169 = vsel %vm158, %v133, 0
    %171 = vmatprep.subr.mxu0 0.0
    %172 = vmatpush1.msra.mxu0 %v125
    %173 = vmatprep.subr.mxu0 0.0
    %174 = vmatpush1.msra.mxu0 0.0
    %175 = vmatprep.subr.mxu0 0.0
    %176 = vmatpush1.msra.mxu0 0.0
    %177 = vmatprep.subr.mxu0 0.0
    %178 = vmatpush1.msra.mxu0 0.0
    %179 = vmatprep.subr.mxu0 0.0
    %180 = vmatpush1.msra.mxu0 0.0
    %181 = vmatprep.subr.mxu0 0.0
    %182 = vmatpush1.msra.mxu0 0.0
    %183 = vmatprep.subr.mxu0 0.0
    %184 = vmatpush1.msra.mxu0 0.0
    %185 = vmatprep.subr.mxu0 0.0
    %186 = vmatpush1.msra.mxu0 0.0
    %187 = vmatprep.subr.mxu0 0.0
    %188 = vmatpush1.msra.mxu0 0.0
    %189 = vmatprep.subr.mxu0 0.0
    %190 = vmatpush1.msra.mxu0 0.0
    %191 = vmatprep.subr.mxu0 0.0
    %192 = vmatpush1.msra.mxu0 0.0
    %193 = vmatprep.subr.mxu0 0.0
    %194 = vmatpush1.msra.mxu0 0.0
    %195 = vmatprep.subr.mxu0 0.0
    %196 = vmatpush1.msra.mxu0 0.0
    %197 = vmatprep.subr.mxu0 0.0
    %198 = vmatpush1.msra.mxu0 0.0
    %199 = vmatprep.subr.mxu0 0.0
    %200 = vmatpush1.msra.mxu0 0.0
    %201 = vmatprep.subr.mxu0 0.0
    %202 = vmatpush1.msra.mxu0 0.0
    %203 = vmatprep.subr.mxu0 0.0
    %204 = vmatpush1.msra.mxu0 0.0
    %205 = vmatprep.subr.mxu0 0.0
    %206 = vmatpush1.msra.mxu0 0.0
    %207 = vmatprep.subr.mxu0 0.0
    %208 = vmatpush1.msra.mxu0 0.0
    %209 = vmatprep.subr.mxu0 0.0
    %210 = vmatpush1.msra.mxu0 0.0
    %211 = vmatprep.subr.mxu0 0.0
    %212 = vmatpush1.msra.mxu0 0.0
    %213 = vmatprep.subr.mxu0 0.0
    %214 = vmatpush1.msra.mxu0 0.0
    %215 = vmatprep.subr.mxu0 0.0
    %216 = vmatpush1.msra.mxu0 0.0
    %217 = vmatprep.subr.mxu0 0.0
    %218 = vmatpush1.msra.mxu0 0.0
    %219 = vmatprep.subr.mxu0 0.0
    %220 = vmatpush1.msra.mxu0 0.0
    %221 = vmatprep.subr.mxu0 0.0
    %222 = vmatpush1.msra.mxu0 0.0
    %223 = vmatprep.subr.mxu0 0.0
    %224 = vmatpush1.msra.mxu0 0.0
    %225 = vmatprep.subr.mxu0 0.0
    %226 = vmatpush1.msra.mxu0 0.0
    %227 = vmatprep.subr.mxu0 0.0
    %228 = vmatpush1.msra.mxu0 0.0
    %229 = vmatprep.subr.mxu0 0.0
    %230 = vmatpush1.msra.mxu0 0.0
    %231 = vmatprep.subr.mxu0 0.0
    %232 = vmatpush1.msra.mxu0 0.0
    %233 = vmatprep.subr.mxu0 0.0
    %234 = vmatpush1.msra.mxu0 0.0
    %235 = vmatprep.mubr.f32.mxu0 0.0
    %236 = vmatmul.mubr.f32.gmra.mrb[0].mxu0 %v160
    %v237 = vpop.f32.mrb[0].mxu0
    %v238 = vadd.f32 %v141, %v237
    %v239 = vpop.f32.mrb[0].mxu0
    %240 = vmatprep.mubr.f32.mxu0 0.0
    %241 = vmatmul.mubr.f32.gmra.mrb[0].mxu0 %v163
    %v242 = vpop.f32.mrb[0].mxu0
    %v243 = vadd.f32 %v146, %v242
    %v244 = vpop.f32.mrb[0].mxu0
    %245 = vmatprep.mubr.f32.mxu0 0.0
    %246 = vmatmul.mubr.f32.gmra.mrb[0].mxu0 %v166
    %v247 = vpop.f32.mrb[0].mxu0
    %v248 = vadd.f32 %v151, %v247
    %v249 = vpop.f32.mrb[0].mxu0
    %250 = vmatprep.mubr.f32.mxu0 0.0
    %251 = vmatmul.mubr.f32.gmra.mrb[0].mxu0 %v169
    %v252 = vpop.f32.mrb[0].mxu0
    %v253 = vadd.f32 %v156, %v252
    %v254 = vpop.f32.mrb[0].mxu0
    %255 = vdwg.mxu0
    %v256 = vmax.f32 %v238, 0.0
    %v257 = vmax.f32 %v243, 0.0
    %v258 = vmax.f32 %v248, 0.0
    %v259 = vmax.f32 %v253, 0.0
    %v260 = vpack.c.bf16 %v257, %v256
    %v261 = vpack.c.bf16 %v259, %v258
    %262 = vmatprep.subr.bf16.mxu0 0
    %263 = vmatpush1.bf16.msra.mxu0 %v74
    %264 = vmatprep.subr.bf16.mxu0 0
    %265 = vmatpush1.bf16.msra.mxu0 %v75
    %266 = vmatprep.subr.bf16.mxu0 0
    %267 = vmatpush1.bf16.msra.mxu0 %v76
    %268 = vmatprep.subr.bf16.mxu0 0
    %269 = vmatpush1.bf16.msra.mxu0 %v77
    %270 = vmatprep.subr.bf16.mxu0 0
    %271 = vmatpush1.bf16.msra.mxu0 %v78
    %272 = vmatprep.subr.bf16.mxu0 0
    %273 = vmatpush1.bf16.msra.mxu0 %v79
    %274 = vmatprep.subr.bf16.mxu0 0
    %275 = vmatpush1.bf16.msra.mxu0 %v80
    %276 = vmatprep.subr.bf16.mxu0 0
    %277 = vmatpush1.bf16.msra.mxu0 %v81
    %278 = vmatprep.subr.bf16.mxu0 0
    %279 = vmatpush1.bf16.msra.mxu0 0
    %280 = vmatprep.subr.bf16.mxu0 0
    %281 = vmatpush1.bf16.msra.mxu0 0
    %282 = vmatprep.subr.bf16.mxu0 0
    %283 = vmatpush1.bf16.msra.mxu0 0
    %284 = vmatprep.subr.bf16.mxu0 0
    %285 = vmatpush1.bf16.msra.mxu0 0
    %286 = vmatprep.subr.bf16.mxu0 0
    %287 = vmatpush1.bf16.msra.mxu0 0
    %288 = vmatprep.subr.bf16.mxu0 0
    %289 = vmatpush1.bf16.msra.mxu0 0
    %290 = vmatprep.subr.bf16.mxu0 0
    %291 = vmatpush1.bf16.msra.mxu0 0
    %292 = vmatprep.subr.bf16.mxu0 0
    %293 = vmatpush1.bf16.msra.mxu0 0
    %294 = vmatprep.mubr.bf16.mxu0 0
    %295 = vmatmul.mubr.bf16.gmra.mrb[0].mxu0 %v260
    %v296 = vpop.f32.mrb[0].mxu0
    %v297 = vadd.f32 0.0, %v296
    %v298 = vpop.f32.mrb[0].mxu0
    %v299 = vpop.f32.mrb[0].mxu0
    %v300 = vadd.f32 0.0, %v299
    %v301 = vpop.f32.mrb[0].mxu0
    %302 = vmatprep.mubr.bf16.mxu0 0
    %303 = vmatmul.mubr.bf16.gmra.mrb[0].mxu0 %v261
    %v304 = vpop.f32.mrb[0].mxu0
    %v305 = vadd.f32 0.0, %v304
    %v306 = vpop.f32.mrb[0].mxu0
    %v307 = vpop.f32.mrb[0].mxu0
    %v308 = vadd.f32 0.0, %v307
    %v309 = vpop.f32.mrb[0].mxu0
    %310 = vdwg.mxu0
    %v311 = vld [vmem:[%s4] sm:$0xff]
    %v312 = vld [vmem:[%s5] sm:$0xff]
    %314 = vset.pattern.permute.xlu0 0
    %315 = vperm.xlu0 %314, %v312
    %v316 = vpop.permute.xlu0 %315
    %vm318 = vcmask 261120
    %v320 = vsel %vm318, %v311, 0
    %322 = vmatprep.subr.mxu0 0.0
    %323 = vmatpush1.msra.mxu0 %v297
    %324 = vmatprep.subr.mxu0 0.0
    %325 = vmatpush1.msra.mxu0 %v300
    %326 = vmatprep.subr.mxu0 0.0
    %327 = vmatpush1.msra.mxu0 %v305
    %328 = vmatprep.subr.mxu0 0.0
    %329 = vmatpush1.msra.mxu0 %v308
    %330 = vmatprep.subr.mxu0 0.0
    %331 = vmatpush1.msra.mxu0 0.0
    %332 = vmatprep.subr.mxu0 0.0
    %333 = vmatpush1.msra.mxu0 0.0
    %334 = vmatprep.subr.mxu0 0.0
    %335 = vmatpush1.msra.mxu0 0.0
    %336 = vmatprep.subr.mxu0 0.0
    %337 = vmatpush1.msra.mxu0 0.0
    %338 = vmatprep.subr.mxu0 0.0
    %339 = vmatpush1.msra.mxu0 0.0
    %340 = vmatprep.subr.mxu0 0.0
    %341 = vmatpush1.msra.mxu0 0.0
    %342 = vmatprep.subr.mxu0 0.0
    %343 = vmatpush1.msra.mxu0 0.0
    %344 = vmatprep.subr.mxu0 0.0
    %345 = vmatpush1.msra.mxu0 0.0
    %346 = vmatprep.subr.mxu0 0.0
    %347 = vmatpush1.msra.mxu0 0.0
    %348 = vmatprep.subr.mxu0 0.0
    %349 = vmatpush1.msra.mxu0 0.0
    %350 = vmatprep.subr.mxu0 0.0
    %351 = vmatpush1.msra.mxu0 0.0
    %352 = vmatprep.subr.mxu0 0.0
    %353 = vmatpush1.msra.mxu0 0.0
    %354 = vmatprep.subr.mxu0 0.0
    %355 = vmatpush1.msra.mxu0 0.0
    %356 = vmatprep.subr.mxu0 0.0
    %357 = vmatpush1.msra.mxu0 0.0
    %358 = vmatprep.subr.mxu0 0.0
    %359 = vmatpush1.msra.mxu0 0.0
    %360 = vmatprep.subr.mxu0 0.0
    %361 = vmatpush1.msra.mxu0 0.0
    %362 = vmatprep.subr.mxu0 0.0
    %363 = vmatpush1.msra.mxu0 0.0
    %364 = vmatprep.subr.mxu0 0.0
    %365 = vmatpush1.msra.mxu0 0.0
    %366 = vmatprep.subr.mxu0 0.0
    %367 = vmatpush1.msra.mxu0 0.0
    %368 = vmatprep.subr.mxu0 0.0
    %369 = vmatpush1.msra.mxu0 0.0
    %370 = vmatprep.subr.mxu0 0.0
    %371 = vmatpush1.msra.mxu0 0.0
    %372 = vmatprep.subr.mxu0 0.0
    %373 = vmatpush1.msra.mxu0 0.0
    %374 = vmatprep.subr.mxu0 0.0
    %375 = vmatpush1.msra.mxu0 0.0
    %376 = vmatprep.subr.mxu0 0.0
    %377 = vmatpush1.msra.mxu0 0.0
    %378 = vmatprep.subr.mxu0 0.0
    %379 = vmatpush1.msra.mxu0 0.0
    %380 = vmatprep.subr.mxu0 0.0
    %381 = vmatpush1.msra.mxu0 0.0
    %382 = vmatprep.subr.mxu0 0.0
    %383 = vmatpush1.msra.mxu0 0.0
    %384 = vmatprep.subr.mxu0 0.0
    %385 = vmatpush1.msra.mxu0 0.0
    %386 = vmatprep.mubr.f32.mxu0 0.0
    %387 = vmatmul.mubr.f32.gmra.mrb[0].mxu0 %v320
    %v388 = vpop.f32.mrb[0].mxu0
    %v389 = vadd.f32 %v316, %v388
    %v390 = vpop.f32.mrb[0].mxu0
    %391 = vdwg.mxu0
    %v392 = vmax.f32 %v389, 0.0
    %393 = vst [vmem:[#allocation2] sm:$0xff] %v392
    // Predicated region
    $region26: #{tpu_custom_call.1} parent=1 // pred_check
      _
    $region27: #{tpu_custom_call.1} parent=1 // pred_check_branch
      %395 = sbr.rel (0) target = $region29
    $region28: #{tpu_custom_call.1} parent=1 // pred_region
      %s397 = ssub.s32 128, 128
      %398 = vsyncadd [#allocation3], %s397
      %s400 = sshll.u32 [#allocation2], 4
      %s401 = int_to_ptr.vmem [resolvable:$true] %s400
      %403 = dma.vmem_to_hbm [thread:$0]  %s401, 128, %s6, [#allocation3]
    $region29: #{tpu_custom_call.1} parent=1 // pred_fallthru
      _
    // Predicated region
    $region30: #{tpu_custom_call.1} parent=1 // pred_check
      _
    $region31: #{tpu_custom_call.1} parent=1 // pred_check_branch
      %405 = sbr.rel (0) target = $region33
    $region32: #{tpu_custom_call.1} parent=1 // pred_region
      %406 = dma.done [#allocation3], 128
    $region33: #{tpu_custom_call.1} parent=1 // pred_fallthru
      _
    %407 = vsyncpa [#allocation3], 1

</llo_original>
